<compile_context>
chip_gen: v5e
topology: v5e:2x2
jax: 0.10.0
libtpu: 0.0.40
codegen_flags: <defaults>
</compile_context>

<pallas_src>
import jax
import jax.numpy as jnp
from jax.experimental import pallas as pl
from jax.experimental.pallas import tpu as pltpu

TIMESTEP = 0.1


def _rk4_kernel(init_ref, u_ref, wx_ref, wu_ref, b_ref, out_ref):
    """init_ref: (B, D); u_ref: (L, B, U) time-major controls; wx_ref: (D, D);
    wu_ref: (U, D); b_ref: (1, D); out_ref: (B, L*D) lane-dense output."""
    dt = jnp.float32(TIMESTEP)
    half_dt = jnp.float32(0.5 * TIMESTEP)
    dt_over_6 = jnp.float32(TIMESTEP / 6.0)

    L, B, U = u_ref.shape
    D = wx_ref.shape[0]

    wx = wx_ref[...]
    wu = wu_ref[...]
    b = b_ref[...]                                   # (1, D)

    # Fused, hoisted control term: one (L*B, U) @ (U, D) MXU dot, done once
    # before the serial chain starts.  c / dc stay in vregs.
    u_flat = u_ref[...].reshape(L * B, U)
    c = (jnp.dot(u_flat, wu, preferred_element_type=jnp.float32) + b).reshape(L, B, D)
    dc = dt * c                                      # dt-scaled term for steps >= 1

    # Folded transition matrix for steps >= 1: A = I + dt*Wx (built once,
    # off the critical path).
    eye = (jax.lax.broadcasted_iota(jnp.int32, (D, D), 0)
           == jax.lax.broadcasted_iota(jnp.int32, (D, D), 1)).astype(jnp.float32)
    a_mat = eye + dt * wx

    def dyn(x, c_i):
        return jnp.dot(x, wx, preferred_element_type=jnp.float32) + c_i

    # --- step 0: genuine RK4 (matches the reference's i == 0 branch) ---
    x0 = init_ref[...]
    c0 = c[0]
    k1 = dyn(x0, c0)
    k2 = dyn(x0 + half_dt * k1, c0)
    k3 = dyn(x0 + half_dt * k2, c0)
    k4 = dyn(x0 + dt * k3, c0)
    x = x0 + dt_over_6 * (k1 + 2.0 * k2 + 2.0 * k3 + k4)
    out_ref[:, 0:D] = x

    # --- steps 1..L-1: bug-faithful branch ---
    # k1..k4 are identical (all evaluated at the previous state), so the
    # update is x + dt*k with k = x@Wx + c_i; folded into one matmul + one add
    # per step.  L is small and static -> fully unrolled, state stays in vregs.
    for i in range(1, L):
        x = jnp.dot(x, a_mat, preferred_element_type=jnp.float32) + dc[i]
        out_ref[:, i * D:(i + 1) * D] = x


def rk4_pallas(initial_state, control_inputs, wx, wu, b):
    """initial_state: (B, D); control_inputs: (B, L, U) -> returns (B, L, D)."""
    B, D = initial_state.shape
    _, L, U = control_inputs.shape

    # Time-major controls so each per-step slice inside the kernel is a full
    # leading-axis tile (no sublane-strided selects).
    u_t = jnp.transpose(control_inputs, (1, 0, 2))   # (L, B, U)
    b2 = b.reshape(1, D)

    vmem = pl.BlockSpec(memory_space=pltpu.MemorySpace.VMEM)
    out = pl.pallas_call(
        _rk4_kernel,
        out_shape=jax.ShapeDtypeStruct((B, L * D), jnp.float32),
        in_specs=[vmem, vmem, vmem, vmem, vmem],
        out_specs=vmem,
    )(initial_state, u_t, wx, wu, b2)

    # Lane-dense kernel output -> (B, L, D) via a free row-major reshape.
    return out.reshape(B, L, D)


def rk4_reference(initial_state, control_inputs, wx, wu, b):
    """Pure-JAX replica of the PyTorch forward (batch mode, include_initial_state=False)."""
    dt = TIMESTEP

    def dyn(x, u):
        return x @ wx + u @ wu + b

    B, L, U = control_inputs.shape
    states = []
    x0 = initial_state
    u0 = control_inputs[:, 0]
    k1 = dyn(x0, u0)
    k2 = dyn(x0 + dt * k1 / 2, u0)
    k3 = dyn(x0 + dt * k2 / 2, u0)
    k4 = dyn(x0 + dt * k3, u0)
    states.append(x0 + dt * (k1 + 2 * k2 + 2 * k3 + k4) / 6)
    for i in range(1, L):
        prev = states[i - 1]
        ui = control_inputs[:, i]
        k1 = dyn(prev, ui)
        k2 = dyn(prev, ui)  # bug-faithful: evaluated at prev state
        k3 = dyn(prev, ui)
        k4 = dyn(prev, ui)
        states.append(prev + dt * (k1 + 2 * k2 + 2 * k3 + k4) / 6)
    return jnp.stack(states, axis=1)


if __name__ == "__main__":
    B, L, D, U = 8, 8, 32, 16  # batch, seq, state_dims, input_dims

    key = jax.random.PRNGKey(0)
    k1, k2, k3, k4, k5 = jax.random.split(key, 5)
    initial_state = jax.random.normal(k1, (B, D), dtype=jnp.float32)
    control_inputs = jax.random.normal(k2, (B, L, U), dtype=jnp.float32)
    # Deterministic "dynamics" parameters (scaled for stability).
    wx = 0.05 * jax.random.normal(k3, (D, D), dtype=jnp.float32)
    wu = 0.05 * jax.random.normal(k4, (U, D), dtype=jnp.float32)
    b = 0.01 * jax.random.normal(k5, (D,), dtype=jnp.float32)

    out = rk4_pallas(initial_state, control_inputs, wx, wu, b)
    out = jax.block_until_ready(out)

    ref = rk4_reference(initial_state, control_inputs, wx, wu, b)
    assert out.shape == (B, L, D)
    assert jnp.allclose(out, ref, rtol=1e-4, atol=1e-4)

    print("KERNEL_OK")
</pallas_src>

<mosaic_0001>
module attributes {stable_mosaic.version = 11 : i64} {
  func.func @_rk4_kernel(%arg0: memref<8x32xf32, #tpu.memory_space<vmem>>, %arg1: memref<8x8x16xf32, #tpu.memory_space<vmem>>, %arg2: memref<32x32xf32, #tpu.memory_space<vmem>>, %arg3: memref<16x32xf32, #tpu.memory_space<vmem>>, %arg4: memref<1x32xf32, #tpu.memory_space<vmem>>, %arg5: memref<8x256xf32, #tpu.memory_space<vmem>>) attributes {dimension_semantics = [], scalar_prefetch = 0 : i64, scratch_operands = 0 : i64, tpu.core_type = #tpu.core_type<tc>} {
    %c0 = arith.constant 0 : index
    %c0_0 = arith.constant 0 : index
    %0 = vector.load %arg2[%c0, %c0_0] : memref<32x32xf32, #tpu.memory_space<vmem>>, vector<32x32xf32>
    %c0_1 = arith.constant 0 : index
    %c0_2 = arith.constant 0 : index
    %1 = vector.load %arg3[%c0_1, %c0_2] : memref<16x32xf32, #tpu.memory_space<vmem>>, vector<16x32xf32>
    %c0_3 = arith.constant 0 : index
    %c0_4 = arith.constant 0 : index
    %2 = vector.load %arg4[%c0_3, %c0_4] : memref<1x32xf32, #tpu.memory_space<vmem>>, vector<1x32xf32>
    %c0_5 = arith.constant 0 : index
    %c0_6 = arith.constant 0 : index
    %c0_7 = arith.constant 0 : index
    %3 = vector.load %arg1[%c0_5, %c0_6, %c0_7] : memref<8x8x16xf32, #tpu.memory_space<vmem>>, vector<8x8x16xf32>
    %4 = vector.shape_cast %3 : vector<8x8x16xf32> to vector<64x16xf32>
    %cst = arith.constant dense<0.000000e+00> : vector<64x32xf32>
    %5 = tpu.matmul %4, %1, %cst {dimension_numbers = #tpu.dot_dimension_numbers<[1], [0], [0], [1], [0, 0, 1, 1], [], []>} : vector<64x16xf32>, vector<16x32xf32>, vector<64x32xf32> -> vector<64x32xf32>
    %6 = vector.broadcast %2 : vector<1x32xf32> to vector<64x32xf32>
    %7 = arith.addf %5, %6 : vector<64x32xf32>
    %8 = vector.shape_cast %7 : vector<64x32xf32> to vector<8x8x32xf32>
    %cst_8 = arith.constant 1.000000e-01 : f32
    %9 = vector.broadcast %cst_8 : f32 to vector<8x8x32xf32>
    %10 = arith.mulf %9, %8 : vector<8x8x32xf32>
    %11 = tpu.iota {dimensions = array<i32: 0>} : vector<32x32xi32>
    %12 = tpu.iota {dimensions = array<i32: 1>} : vector<32x32xi32>
    %13 = arith.cmpi eq, %11, %12 : vector<32x32xi32>
    %14 = arith.extui %13 : vector<32x32xi1> to vector<32x32xi32>
    %15 = arith.sitofp %14 : vector<32x32xi32> to vector<32x32xf32>
    %cst_9 = arith.constant 1.000000e-01 : f32
    %16 = vector.broadcast %cst_9 : f32 to vector<32x32xf32>
    %17 = arith.mulf %16, %0 : vector<32x32xf32>
    %18 = arith.addf %15, %17 : vector<32x32xf32>
    %c0_10 = arith.constant 0 : index
    %c0_11 = arith.constant 0 : index
    %19 = vector.load %arg0[%c0_10, %c0_11] : memref<8x32xf32, #tpu.memory_space<vmem>>, vector<8x32xf32>
    %20 = vector.extract_strided_slice %8 {offsets = [0, 0, 0], sizes = [1, 8, 32], strides = [1, 1, 1]} : vector<8x8x32xf32> to vector<1x8x32xf32>
    %21 = vector.shape_cast %20 : vector<1x8x32xf32> to vector<8x32xf32>
    %cst_12 = arith.constant dense<0.000000e+00> : vector<8x32xf32>
    %22 = tpu.matmul %19, %0, %cst_12 {dimension_numbers = #tpu.dot_dimension_numbers<[1], [0], [0], [1], [0, 0, 1, 1], [], []>} : vector<8x32xf32>, vector<32x32xf32>, vector<8x32xf32> -> vector<8x32xf32>
    %23 = arith.addf %22, %21 : vector<8x32xf32>
    %cst_13 = arith.constant 5.000000e-02 : f32
    %24 = vector.broadcast %cst_13 : f32 to vector<8x32xf32>
    %25 = arith.mulf %24, %23 : vector<8x32xf32>
    %26 = arith.addf %19, %25 : vector<8x32xf32>
    %cst_14 = arith.constant dense<0.000000e+00> : vector<8x32xf32>
    %27 = tpu.matmul %26, %0, %cst_14 {dimension_numbers = #tpu.dot_dimension_numbers<[1], [0], [0], [1], [0, 0, 1, 1], [], []>} : vector<8x32xf32>, vector<32x32xf32>, vector<8x32xf32> -> vector<8x32xf32>
    %28 = arith.addf %27, %21 : vector<8x32xf32>
    %cst_15 = arith.constant 5.000000e-02 : f32
    %29 = vector.broadcast %cst_15 : f32 to vector<8x32xf32>
    %30 = arith.mulf %29, %28 : vector<8x32xf32>
    %31 = arith.addf %19, %30 : vector<8x32xf32>
    %cst_16 = arith.constant dense<0.000000e+00> : vector<8x32xf32>
    %32 = tpu.matmul %31, %0, %cst_16 {dimension_numbers = #tpu.dot_dimension_numbers<[1], [0], [0], [1], [0, 0, 1, 1], [], []>} : vector<8x32xf32>, vector<32x32xf32>, vector<8x32xf32> -> vector<8x32xf32>
    %33 = arith.addf %32, %21 : vector<8x32xf32>
    %cst_17 = arith.constant 1.000000e-01 : f32
    %34 = vector.broadcast %cst_17 : f32 to vector<8x32xf32>
    %35 = arith.mulf %34, %33 : vector<8x32xf32>
    %36 = arith.addf %19, %35 : vector<8x32xf32>
    %cst_18 = arith.constant dense<0.000000e+00> : vector<8x32xf32>
    %37 = tpu.matmul %36, %0, %cst_18 {dimension_numbers = #tpu.dot_dimension_numbers<[1], [0], [0], [1], [0, 0, 1, 1], [], []>} : vector<8x32xf32>, vector<32x32xf32>, vector<8x32xf32> -> vector<8x32xf32>
    %38 = arith.addf %37, %21 : vector<8x32xf32>
    %cst_19 = arith.constant 2.000000e+00 : f32
    %39 = vector.broadcast %cst_19 : f32 to vector<8x32xf32>
    %40 = arith.mulf %39, %28 : vector<8x32xf32>
    %41 = arith.addf %23, %40 : vector<8x32xf32>
    %cst_20 = arith.constant 2.000000e+00 : f32
    %42 = vector.broadcast %cst_20 : f32 to vector<8x32xf32>
    %43 = arith.mulf %42, %33 : vector<8x32xf32>
    %44 = arith.addf %41, %43 : vector<8x32xf32>
    %45 = arith.addf %44, %38 : vector<8x32xf32>
    %cst_21 = arith.constant 0.0166666675 : f32
    %46 = vector.broadcast %cst_21 : f32 to vector<8x32xf32>
    %47 = arith.mulf %46, %45 : vector<8x32xf32>
    %48 = arith.addf %19, %47 : vector<8x32xf32>
    %c0_22 = arith.constant 0 : index
    %c0_23 = arith.constant 0 : index
    %49 = vector.load %arg5[%c0_22, %c0_23] : memref<8x256xf32, #tpu.memory_space<vmem>>, vector<8x32xf32>
    tpu.vector_store %arg5[%c0_22, %c0_23], %48 {strides = array<i32>} : memref<8x256xf32, #tpu.memory_space<vmem>>, vector<8x32xf32>,
    %cst_24 = arith.constant dense<0.000000e+00> : vector<8x32xf32>
    %50 = tpu.matmul %48, %18, %cst_24 {dimension_numbers = #tpu.dot_dimension_numbers<[1], [0], [0], [1], [0, 0, 1, 1], [], []>} : vector<8x32xf32>, vector<32x32xf32>, vector<8x32xf32> -> vector<8x32xf32>
    %51 = vector.extract_strided_slice %10 {offsets = [1, 0, 0], sizes = [1, 8, 32], strides = [1, 1, 1]} : vector<8x8x32xf32> to vector<1x8x32xf32>
    %52 = vector.shape_cast %51 : vector<1x8x32xf32> to vector<8x32xf32>
    %53 = arith.addf %50, %52 : vector<8x32xf32>
    %c0_25 = arith.constant 0 : index
    %c32 = arith.constant 32 : index
    %54 = vector.load %arg5[%c0_25, %c32] : memref<8x256xf32, #tpu.memory_space<vmem>>, vector<8x32xf32>
    tpu.vector_store %arg5[%c0_25, %c32], %53 {strides = array<i32>} : memref<8x256xf32, #tpu.memory_space<vmem>>, vector<8x32xf32>,
    %cst_26 = arith.constant dense<0.000000e+00> : vector<8x32xf32>
    %55 = tpu.matmul %53, %18, %cst_26 {dimension_numbers = #tpu.dot_dimension_numbers<[1], [0], [0], [1], [0, 0, 1, 1], [], []>} : vector<8x32xf32>, vector<32x32xf32>, vector<8x32xf32> -> vector<8x32xf32>
    %56 = vector.extract_strided_slice %10 {offsets = [2, 0, 0], sizes = [1, 8, 32], strides = [1, 1, 1]} : vector<8x8x32xf32> to vector<1x8x32xf32>
    %57 = vector.shape_cast %56 : vector<1x8x32xf32> to vector<8x32xf32>
    %58 = arith.addf %55, %57 : vector<8x32xf32>
    %c0_27 = arith.constant 0 : index
    %c64 = arith.constant 64 : index
    %59 = vector.load %arg5[%c0_27, %c64] : memref<8x256xf32, #tpu.memory_space<vmem>>, vector<8x32xf32>
    tpu.vector_store %arg5[%c0_27, %c64], %58 {strides = array<i32>} : memref<8x256xf32, #tpu.memory_space<vmem>>, vector<8x32xf32>,
    %cst_28 = arith.constant dense<0.000000e+00> : vector<8x32xf32>
    %60 = tpu.matmul %58, %18, %cst_28 {dimension_numbers = #tpu.dot_dimension_numbers<[1], [0], [0], [1], [0, 0, 1, 1], [], []>} : vector<8x32xf32>, vector<32x32xf32>, vector<8x32xf32> -> vector<8x32xf32>
    %61 = vector.extract_strided_slice %10 {offsets = [3, 0, 0], sizes = [1, 8, 32], strides = [1, 1, 1]} : vector<8x8x32xf32> to vector<1x8x32xf32>
    %62 = vector.shape_cast %61 : vector<1x8x32xf32> to vector<8x32xf32>
    %63 = arith.addf %60, %62 : vector<8x32xf32>
    %c0_29 = arith.constant 0 : index
    %c96 = arith.constant 96 : index
    %64 = vector.load %arg5[%c0_29, %c96] : memref<8x256xf32, #tpu.memory_space<vmem>>, vector<8x32xf32>
    tpu.vector_store %arg5[%c0_29, %c96], %63 {strides = array<i32>} : memref<8x256xf32, #tpu.memory_space<vmem>>, vector<8x32xf32>,
    %cst_30 = arith.constant dense<0.000000e+00> : vector<8x32xf32>
    %65 = tpu.matmul %63, %18, %cst_30 {dimension_numbers = #tpu.dot_dimension_numbers<[1], [0], [0], [1], [0, 0, 1, 1], [], []>} : vector<8x32xf32>, vector<32x32xf32>, vector<8x32xf32> -> vector<8x32xf32>
    %66 = vector.extract_strided_slice %10 {offsets = [4, 0, 0], sizes = [1, 8, 32], strides = [1, 1, 1]} : vector<8x8x32xf32> to vector<1x8x32xf32>
    %67 = vector.shape_cast %66 : vector<1x8x32xf32> to vector<8x32xf32>
    %68 = arith.addf %65, %67 : vector<8x32xf32>
    %c0_31 = arith.constant 0 : index
    %c128 = arith.constant 128 : index
    %69 = vector.load %arg5[%c0_31, %c128] : memref<8x256xf32, #tpu.memory_space<vmem>>, vector<8x32xf32>
    tpu.vector_store %arg5[%c0_31, %c128], %68 {strides = array<i32>} : memref<8x256xf32, #tpu.memory_space<vmem>>, vector<8x32xf32>,
    %cst_32 = arith.constant dense<0.000000e+00> : vector<8x32xf32>
    %70 = tpu.matmul %68, %18, %cst_32 {dimension_numbers = #tpu.dot_dimension_numbers<[1], [0], [0], [1], [0, 0, 1, 1], [], []>} : vector<8x32xf32>, vector<32x32xf32>, vector<8x32xf32> -> vector<8x32xf32>
    %71 = vector.extract_strided_slice %10 {offsets = [5, 0, 0], sizes = [1, 8, 32], strides = [1, 1, 1]} : vector<8x8x32xf32> to vector<1x8x32xf32>
    %72 = vector.shape_cast %71 : vector<1x8x32xf32> to vector<8x32xf32>
    %73 = arith.addf %70, %72 : vector<8x32xf32>
    %c0_33 = arith.constant 0 : index
    %c160 = arith.constant 160 : index
    %74 = vector.load %arg5[%c0_33, %c160] : memref<8x256xf32, #tpu.memory_space<vmem>>, vector<8x32xf32>
    tpu.vector_store %arg5[%c0_33, %c160], %73 {strides = array<i32>} : memref<8x256xf32, #tpu.memory_space<vmem>>, vector<8x32xf32>,
    %cst_34 = arith.constant dense<0.000000e+00> : vector<8x32xf32>
    %75 = tpu.matmul %73, %18, %cst_34 {dimension_numbers = #tpu.dot_dimension_numbers<[1], [0], [0], [1], [0, 0, 1, 1], [], []>} : vector<8x32xf32>, vector<32x32xf32>, vector<8x32xf32> -> vector<8x32xf32>
    %76 = vector.extract_strided_slice %10 {offsets = [6, 0, 0], sizes = [1, 8, 32], strides = [1, 1, 1]} : vector<8x8x32xf32> to vector<1x8x32xf32>
    %77 = vector.shape_cast %76 : vector<1x8x32xf32> to vector<8x32xf32>
    %78 = arith.addf %75, %77 : vector<8x32xf32>
    %c0_35 = arith.constant 0 : index
    %c192 = arith.constant 192 : index
    %79 = vector.load %arg5[%c0_35, %c192] : memref<8x256xf32, #tpu.memory_space<vmem>>, vector<8x32xf32>
    tpu.vector_store %arg5[%c0_35, %c192], %78 {strides = array<i32>} : memref<8x256xf32, #tpu.memory_space<vmem>>, vector<8x32xf32>,
    %cst_36 = arith.constant dense<0.000000e+00> : vector<8x32xf32>
    %80 = tpu.matmul %78, %18, %cst_36 {dimension_numbers = #tpu.dot_dimension_numbers<[1], [0], [0], [1], [0, 0, 1, 1], [], []>} : vector<8x32xf32>, vector<32x32xf32>, vector<8x32xf32> -> vector<8x32xf32>
    %81 = vector.extract_strided_slice %10 {offsets = [7, 0, 0], sizes = [1, 8, 32], strides = [1, 1, 1]} : vector<8x8x32xf32> to vector<1x8x32xf32>
    %82 = vector.shape_cast %81 : vector<1x8x32xf32> to vector<8x32xf32>
    %83 = arith.addf %80, %82 : vector<8x32xf32>
    %c0_37 = arith.constant 0 : index
    %c224 = arith.constant 224 : index
    %84 = vector.load %arg5[%c0_37, %c224] : memref<8x256xf32, #tpu.memory_space<vmem>>, vector<8x32xf32>
    tpu.vector_store %arg5[%c0_37, %c224], %83 {strides = array<i32>} : memref<8x256xf32, #tpu.memory_space<vmem>>, vector<8x32xf32>,
    return
  }
}

</mosaic_0001>

<llo_original>
// kernel: tpu_custom_call.1
$region0: #{tpu_custom_call.1}
  #allocation0 [shape = 'u32[]', space=smem, size = 0x4, offset = 0x4, fixed_abs, tag = 'smem constant byte address 0x4 - core index']
  #allocation1 [shape = 'u32[72,128]{1,0:T(1,128)}', space=vmem, size = 0x9000, scoped, tag = 'internal scratch']
  %s0 = inlined_call_operand.hbm [shape: f32[8,32], index: 0, kind: input, shape index: {}]
  %s1 = inlined_call_operand.hbm [shape: f32[8,8,16], index: 1, kind: input, shape index: {}]
  %s2 = inlined_call_operand.hbm [shape: f32[32,32], index: 2, kind: input, shape index: {}]
  %s3 = inlined_call_operand.hbm [shape: f32[16,32], index: 3, kind: input, shape index: {}]
  %s4 = inlined_call_operand.vmem [shape: f32[1,32], index: 4, kind: input, shape index: {}]
  %s5 = inlined_call_operand.hbm [shape: f32[8,256], index: 5, kind: output, shape index: {}]
  %s6 = sld [smem:[#allocation0]]
  $region46: #{tpu_custom_call.1} parent=0
    _
  %s8 = ssub.s32 1, %s6
  %s9 = scalar_select 0, %s8, %s6
  $region1: #{tpu_custom_call.1} parent=0
    #allocation2 [shape = 'u8[4096]{0}', space=vmem, size = 0x1000, scoped, tag = 'input window, operand 0, single buffered']
    #allocation3 [shape = 's32[1]{0}', space=sflag, size = 0x4, scoped, tag = 'scoped memory for tpu_custom_call.1']
    #allocation4 [shape = 's32[1]{0}', space=sflag, size = 0x4, scoped, tag = 'scoped memory for tpu_custom_call.1']
    #allocation5 [shape = 'u8[32768]{0}', space=vmem, size = 0x8000, scoped, tag = 'input window, operand 1, single buffered']
    #allocation6 [shape = 's32[1]{0}', space=sflag, size = 0x4, scoped, tag = 'scoped memory for tpu_custom_call.1']
    #allocation7 [shape = 'u8[16384]{0}', space=vmem, size = 0x4000, scoped, tag = 'input window, operand 2, single buffered']
    #allocation8 [shape = 'u8[8192]{0}', space=vmem, size = 0x2000, scoped, tag = 'input window, operand 3, single buffered']
    #allocation9 [shape = 's32[1]{0}', space=sflag, size = 0x4, scoped, tag = 'scoped memory for tpu_custom_call.1']
    #allocation10 [shape = 'u8[8192]{0}', space=vmem, size = 0x2000, scoped, tag = 'output window, operand 0, single buffered']
    %10 = vsyncpa [#allocation3], 0
    %11 = vsyncpa [#allocation6], 0
    %12 = vsyncpa [#allocation9], 0
    %13 = vsyncpa [#allocation4], 0
    // Predicated region
    $region2: #{tpu_custom_call.1} parent=1 // pred_check
      _
    $region3: #{tpu_custom_call.1} parent=1 // pred_check_branch
      %15 = sbr.rel (0) target = $region5
    $region4: #{tpu_custom_call.1} parent=1 // pred_region
      %17 = vsyncadd [#allocation3], 0
      %s19 = sshll.u32 %s0, 4
      %s20 = int_to_ptr.hbm [resolvable:$true] %s19
      %s21 = sshll.u32 [#allocation2], 4
      %s22 = int_to_ptr.vmem [resolvable:$true] %s21
      %24 = dma.hbm_to_vmem [thread:$0]  %s20, 128, %s22, [#allocation3]
    $region5: #{tpu_custom_call.1} parent=1 // pred_fallthru
      _
    // Predicated region
    $region6: #{tpu_custom_call.1} parent=1 // pred_check
      _
    $region7: #{tpu_custom_call.1} parent=1 // pred_check_branch
      %26 = sbr.rel (0) target = $region9
    $region8: #{tpu_custom_call.1} parent=1 // pred_region
      %28 = vsyncadd [#allocation6], 0
      %s29 = sshll.u32 %s1, 4
      %s30 = int_to_ptr.hbm [resolvable:$true] %s29
      %s31 = sshll.u32 [#allocation5], 4
      %s32 = int_to_ptr.vmem [resolvable:$true] %s31
      %37 = dma.hbm_to_vmem [thread:$0]  %s30, 1024, %s32, [#allocation6], 128, 128, 8
    $region9: #{tpu_custom_call.1} parent=1 // pred_fallthru
      _
    // Predicated region
    $region10: #{tpu_custom_call.1} parent=1 // pred_check
      _
    $region11: #{tpu_custom_call.1} parent=1 // pred_check_branch
      %39 = sbr.rel (0) target = $region13
    $region12: #{tpu_custom_call.1} parent=1 // pred_region
      %41 = vsyncadd [#allocation6], 0
      %s42 = sshll.u32 %s2, 4
      %s43 = int_to_ptr.hbm [resolvable:$true] %s42
      %s44 = sshll.u32 [#allocation7], 4
      %s45 = int_to_ptr.vmem [resolvable:$true] %s44
      %50 = dma.hbm_to_vmem [thread:$0]  %s43, 512, %s45, [#allocation6], 128, 128, 8
    $region13: #{tpu_custom_call.1} parent=1 // pred_fallthru
      _
    // Predicated region
    $region14: #{tpu_custom_call.1} parent=1 // pred_check
      _
    $region15: #{tpu_custom_call.1} parent=1 // pred_check_branch
      %52 = sbr.rel (0) target = $region17
    $region16: #{tpu_custom_call.1} parent=1 // pred_region
      %54 = vsyncadd [#allocation9], 0
      %s55 = sshll.u32 %s3, 4
      %s56 = int_to_ptr.hbm [resolvable:$true] %s55
      %s57 = sshll.u32 [#allocation8], 4
      %s58 = int_to_ptr.vmem [resolvable:$true] %s57
      %63 = dma.hbm_to_vmem [thread:$0]  %s56, 256, %s58, [#allocation9], 128, 128, 8
    $region17: #{tpu_custom_call.1} parent=1 // pred_fallthru
      _
    // Predicated region
    $region18: #{tpu_custom_call.1} parent=1 // pred_check
      _
    $region19: #{tpu_custom_call.1} parent=1 // pred_check_branch
      %65 = sbr.rel (0) target = $region21
    $region20: #{tpu_custom_call.1} parent=1 // pred_region
      _
    $region21: #{tpu_custom_call.1} parent=1 // pred_fallthru
      _
    // Predicated region
    $region22: #{tpu_custom_call.1} parent=1 // pred_check
      _
    $region23: #{tpu_custom_call.1} parent=1 // pred_check_branch
      %67 = sbr.rel (0) target = $region25
    $region24: #{tpu_custom_call.1} parent=1 // pred_region
      %69 = dma.done [#allocation3], 128
    $region25: #{tpu_custom_call.1} parent=1 // pred_fallthru
      _
    // Predicated region
    $region26: #{tpu_custom_call.1} parent=1 // pred_check
      _
    $region27: #{tpu_custom_call.1} parent=1 // pred_check_branch
      %71 = sbr.rel (0) target = $region29
    $region28: #{tpu_custom_call.1} parent=1 // pred_region
      %73 = dma.done [#allocation6], 1024
    $region29: #{tpu_custom_call.1} parent=1 // pred_fallthru
      _
    // Predicated region
    $region30: #{tpu_custom_call.1} parent=1 // pred_check
      _
    $region31: #{tpu_custom_call.1} parent=1 // pred_check_branch
      %75 = sbr.rel (0) target = $region33
    $region32: #{tpu_custom_call.1} parent=1 // pred_region
      %77 = dma.done [#allocation6], 512
    $region33: #{tpu_custom_call.1} parent=1 // pred_fallthru
      _
    // Predicated region
    $region34: #{tpu_custom_call.1} parent=1 // pred_check
      _
    $region35: #{tpu_custom_call.1} parent=1 // pred_check_branch
      %79 = sbr.rel (0) target = $region37
    $region36: #{tpu_custom_call.1} parent=1 // pred_region
      %81 = dma.done [#allocation9], 256
    $region37: #{tpu_custom_call.1} parent=1 // pred_fallthru
      _
    %v82 = vld [vmem:[#allocation7] sm:$0xff]
    %v83 = vld [vmem:[#allocation7 + $0x8] sm:$0xff]
    %v84 = vld [vmem:[#allocation7 + $0x10] sm:$0xff]
    %v85 = vld [vmem:[#allocation7 + $0x18] sm:$0xff]
    %v86 = vld [vmem:[#allocation8] sm:$0xff]
    %v87 = vld [vmem:[#allocation8 + $0x8] sm:$0xff]
    %v88 = vld [vmem:[%s4] sm:$0x1]
    %v89 = vld [vmem:[#allocation5] sm:$0xff]
    %v90 = vld [vmem:[#allocation5 + $0x8] sm:$0xff]
    %v91 = vld [vmem:[#allocation5 + $0x10] sm:$0xff]
    %v92 = vld [vmem:[#allocation5 + $0x18] sm:$0xff]
    %v93 = vld [vmem:[#allocation5 + $0x20] sm:$0xff]
    %v94 = vld [vmem:[#allocation5 + $0x28] sm:$0xff]
    %v95 = vld [vmem:[#allocation5 + $0x30] sm:$0xff]
    %v96 = vld [vmem:[#allocation5 + $0x38] sm:$0xff]
    %v98 = vperm.slane %v88, 0
    %vm100 = vcmask 130048
    %v102 = vsel %vm100, %v89, 0
    %v105 = vsel %vm100, %v90, 0
    %v108 = vsel %vm100, %v91, 0
    %v111 = vsel %vm100, %v92, 0
    %v114 = vsel %vm100, %v93, 0
    %v117 = vsel %vm100, %v94, 0
    %v120 = vsel %vm100, %v95, 0
    %v123 = vsel %vm100, %v96, 0
    %125 = vmatpush.msra.mxu0 0.0
    %126 = vmatpush.msra.mxu0 0.0
    %127 = vmatpush.msra.mxu0 0.0
    %128 = vmatpush.msra.mxu0 0.0
    %129 = vmatpush.msra.mxu0 0.0
    %130 = vmatpush.msra.mxu0 0.0
    %131 = vmatpush.msra.mxu0 0.0
    %132 = vmatpush.msra.mxu0 0.0
    %133 = vmatpush.msra.mxu0 0.0
    %134 = vmatpush.msra.mxu0 0.0
    %135 = vmatpush.msra.mxu0 0.0
    %136 = vmatpush.msra.mxu0 0.0
    %137 = vmatpush.msra.mxu0 0.0
    %138 = vmatpush.msra.mxu0 0.0
    %139 = vmatpush.msra.mxu0 %v87
    %140 = vmatpush.msra.mxu0 %v86
    %141 = vmatmul.f32.gmra.mxu0 %v102
    %v142 = vpop.f32.mrf.mxu0
    %v143 = vadd.f32 %v98, %v142
    %144 = vmatmul.f32.gmra.mxu0 %v105
    %v145 = vpop.f32.mrf.mxu0
    %v146 = vadd.f32 %v98, %v145
    %147 = vmatmul.f32.gmra.mxu0 %v108
    %v148 = vpop.f32.mrf.mxu0
    %v149 = vadd.f32 %v98, %v148
    %150 = vmatmul.f32.gmra.mxu0 %v111
    %v151 = vpop.f32.mrf.mxu0
    %v152 = vadd.f32 %v98, %v151
    %153 = vmatmul.f32.gmra.mxu0 %v114
    %v154 = vpop.f32.mrf.mxu0
    %v155 = vadd.f32 %v98, %v154
    %156 = vmatmul.f32.gmra.mxu0 %v117
    %v157 = vpop.f32.mrf.mxu0
    %v158 = vadd.f32 %v98, %v157
    %159 = vmatmul.f32.gmra.mxu0 %v120
    %v160 = vpop.f32.mrf.mxu0
    %v161 = vadd.f32 %v98, %v160
    %162 = vmatmul.f32.gmra.mxu0 %v123
    %v163 = vpop.f32.mrf.mxu0
    %v164 = vadd.f32 %v98, %v163
    %165 = vdwg.mxu0
    %v166 = vmul.f32 %v146, 0.1
    %v167 = vmul.f32 %v149, 0.1
    %v168 = vmul.f32 %v152, 0.1
    %v169 = vmul.f32 %v155, 0.1
    %v170 = vmul.f32 %v158, 0.1
    %v171 = vmul.f32 %v161, 0.1
    %v172 = vmul.f32 %v164, 0.1
    %v173 = vlaneseq
    %v174 = vshrl.u32 %v173, 7
    %v175 = vadd.s32 %v174, 8
    %v176 = vadd.s32 %v174, 16
    %v177 = vadd.s32 %v174, 24
    %v178 = vlaneseq
    %v179 = vand.u32 %v178, 127
    %vm180 = vcmp.eq.s32.totalorder %v174, %v179
    %vm181 = vcmp.eq.s32.totalorder %v175, %v179
    %vm182 = vcmp.eq.s32.totalorder %v176, %v179
    %vm183 = vcmp.eq.s32.totalorder %v177, %v179
    %v184 = vsel %vm180, 1, 0
    %v185 = vsel %vm181, 1, 0
    %v186 = vsel %vm182, 1, 0
    %v187 = vsel %vm183, 1, 0
    %v188 = vcvt.s32.f32 %v184
    %v189 = vcvt.s32.f32 %v185
    %v190 = vcvt.s32.f32 %v186
    %v191 = vcvt.s32.f32 %v187
    %v192 = vmul.f32 %v82, 0.1
    %v193 = vmul.f32 %v83, 0.1
    %v194 = vmul.f32 %v84, 0.1
    %v195 = vmul.f32 %v85, 0.1
    %v196 = vadd.f32 %v188, %v192
    %v197 = vadd.f32 %v189, %v193
    %v198 = vadd.f32 %v190, %v194
    %v199 = vadd.f32 %v191, %v195
    %v200 = vld [vmem:[#allocation2] sm:$0xff]
    %vm201 = vcmask 261120
    %v203 = vsel %vm201, %v200, 0
    %205 = vmatpush.msra.mxu0 0.0
    %206 = vmatpush.msra.mxu0 0.0
    %207 = vmatpush.msra.mxu0 0.0
    %208 = vmatpush.msra.mxu0 0.0
    %209 = vmatpush.msra.mxu0 0.0
    %210 = vmatpush.msra.mxu0 0.0
    %211 = vmatpush.msra.mxu0 0.0
    %212 = vmatpush.msra.mxu0 0.0
    %213 = vmatpush.msra.mxu0 0.0
    %214 = vmatpush.msra.mxu0 0.0
    %215 = vmatpush.msra.mxu0 0.0
    %216 = vmatpush.msra.mxu0 0.0
    %217 = vmatpush.msra.mxu0 %v85
    %218 = vmatpush.msra.mxu0 %v84
    %219 = vmatpush.msra.mxu0 %v83
    %220 = vmatpush.msra.mxu0 %v82
    %221 = vmatmul.f32.gmra.mxu0 %v203
    %v222 = vpop.f32.mrf.mxu0
    %v223 = vadd.f32 %v143, %v222
    %224 = vdwg.mxu0
    %v225 = vmul.f32 %v223, 0.05
    %v226 = vadd.f32 %v200, %v225
    %v228 = vsel %vm201, %v226, 0
    %230 = vmatpush.msra.mxu0 0.0
    %231 = vmatpush.msra.mxu0 0.0
    %232 = vmatpush.msra.mxu0 0.0
    %233 = vmatpush.msra.mxu0 0.0
    %234 = vmatpush.msra.mxu0 0.0
    %235 = vmatpush.msra.mxu0 0.0
    %236 = vmatpush.msra.mxu0 0.0
    %237 = vmatpush.msra.mxu0 0.0
    %238 = vmatpush.msra.mxu0 0.0
    %239 = vmatpush.msra.mxu0 0.0
    %240 = vmatpush.msra.mxu0 0.0
    %241 = vmatpush.msra.mxu0 0.0
    %242 = vmatpush.msra.mxu0 %v85
    %243 = vmatpush.msra.mxu0 %v84
    %244 = vmatpush.msra.mxu0 %v83
    %245 = vmatpush.msra.mxu0 %v82
    %246 = vmatmul.f32.gmra.mxu0 %v228
    %v247 = vpop.f32.mrf.mxu0
    %v248 = vadd.f32 %v143, %v247
    %249 = vdwg.mxu0
    %v250 = vmul.f32 %v248, 0.05
    %v251 = vadd.f32 %v200, %v250
    %v253 = vsel %vm201, %v251, 0
    %255 = vmatpush.msra.mxu0 0.0
    %256 = vmatpush.msra.mxu0 0.0
    %257 = vmatpush.msra.mxu0 0.0
    %258 = vmatpush.msra.mxu0 0.0
    %259 = vmatpush.msra.mxu0 0.0
    %260 = vmatpush.msra.mxu0 0.0
    %261 = vmatpush.msra.mxu0 0.0
    %262 = vmatpush.msra.mxu0 0.0
    %263 = vmatpush.msra.mxu0 0.0
    %264 = vmatpush.msra.mxu0 0.0
    %265 = vmatpush.msra.mxu0 0.0
    %266 = vmatpush.msra.mxu0 0.0
    %267 = vmatpush.msra.mxu0 %v85
    %268 = vmatpush.msra.mxu0 %v84
    %269 = vmatpush.msra.mxu0 %v83
    %270 = vmatpush.msra.mxu0 %v82
    %271 = vmatmul.f32.gmra.mxu0 %v253
    %v272 = vpop.f32.mrf.mxu0
    %v273 = vadd.f32 %v143, %v272
    %274 = vdwg.mxu0
    %v275 = vmul.f32 %v273, 0.1
    %v276 = vadd.f32 %v200, %v275
    %v278 = vsel %vm201, %v276, 0
    %280 = vmatpush.msra.mxu0 0.0
    %281 = vmatpush.msra.mxu0 0.0
    %282 = vmatpush.msra.mxu0 0.0
    %283 = vmatpush.msra.mxu0 0.0
    %284 = vmatpush.msra.mxu0 0.0
    %285 = vmatpush.msra.mxu0 0.0
    %286 = vmatpush.msra.mxu0 0.0
    %287 = vmatpush.msra.mxu0 0.0
    %288 = vmatpush.msra.mxu0 0.0
    %289 = vmatpush.msra.mxu0 0.0
    %290 = vmatpush.msra.mxu0 0.0
    %291 = vmatpush.msra.mxu0 0.0
    %292 = vmatpush.msra.mxu0 %v85
    %293 = vmatpush.msra.mxu0 %v84
    %294 = vmatpush.msra.mxu0 %v83
    %295 = vmatpush.msra.mxu0 %v82
    %296 = vmatmul.f32.gmra.mxu0 %v278
    %v297 = vpop.f32.mrf.mxu0
    %v298 = vadd.f32 %v143, %v297
    %299 = vdwg.mxu0
    %v300 = vmul.f32 %v248, 2.0
    %v301 = vadd.f32 %v223, %v300
    %v302 = vmul.f32 %v273, 2.0
    %v303 = vadd.f32 %v301, %v302
    %v304 = vadd.f32 %v303, %v298
    %v305 = vmul.f32 %v304, 0.016666668
    %v306 = vadd.f32 %v200, %v305
    %307 = vst.msk [vmem:[#allocation10] sm:$0xff] %vm201, %v306
    %v309 = vsel %vm201, %v306, 0
    %311 = vmatpush.msra.mxu0 0.0
    %312 = vmatpush.msra.mxu0 0.0
    %313 = vmatpush.msra.mxu0 0.0
    %314 = vmatpush.msra.mxu0 0.0
    %315 = vmatpush.msra.mxu0 0.0
    %316 = vmatpush.msra.mxu0 0.0
    %317 = vmatpush.msra.mxu0 0.0
    %318 = vmatpush.msra.mxu0 0.0
    %319 = vmatpush.msra.mxu0 0.0
    %320 = vmatpush.msra.mxu0 0.0
    %321 = vmatpush.msra.mxu0 0.0
    %322 = vmatpush.msra.mxu0 0.0
    %323 = vmatpush.msra.mxu0 %v199
    %324 = vmatpush.msra.mxu0 %v198
    %325 = vmatpush.msra.mxu0 %v197
    %326 = vmatpush.msra.mxu0 %v196
    %327 = vmatmul.f32.gmra.mxu0 %v309
    %v328 = vpop.f32.mrf.mxu0
    %v329 = vadd.f32 %v166, %v328
    %330 = vdwg.mxu0
    %332 = vrot.lane.b32.xlu0 %v329, 32
    %v333 = vpop.permute.xlu0 %332
    %vm335 = vcmask 523520
    %336 = vst.msk [vmem:[#allocation10] sm:$0xff] %vm335, %v333
    %v337 = vsel %vm201, %v329, 0
    %339 = vmatpush.msra.mxu0 0.0
    %340 = vmatpush.msra.mxu0 0.0
    %341 = vmatpush.msra.mxu0 0.0
    %342 = vmatpush.msra.mxu0 0.0
    %343 = vmatpush.msra.mxu0 0.0
    %344 = vmatpush.msra.mxu0 0.0
    %345 = vmatpush.msra.mxu0 0.0
    %346 = vmatpush.msra.mxu0 0.0
    %347 = vmatpush.msra.mxu0 0.0
    %348 = vmatpush.msra.mxu0 0.0
    %349 = vmatpush.msra.mxu0 0.0
    %350 = vmatpush.msra.mxu0 0.0
    %351 = vmatpush.msra.mxu0 %v199
    %352 = vmatpush.msra.mxu0 %v198
    %353 = vmatpush.msra.mxu0 %v197
    %354 = vmatpush.msra.mxu0 %v196
    %355 = vmatmul.f32.gmra.mxu0 %v337
    %v356 = vpop.f32.mrf.mxu0
    %v357 = vadd.f32 %v167, %v356
    %358 = vdwg.mxu0
    %360 = vrot.lane.b32.xlu0 %v357, 64
    %v361 = vpop.permute.xlu0 %360
    %vm363 = vcmask 785920
    %364 = vst.msk [vmem:[#allocation10] sm:$0xff] %vm363, %v361
    %v365 = vsel %vm201, %v357, 0
    %367 = vmatpush.msra.mxu0 0.0
    %368 = vmatpush.msra.mxu0 0.0
    %369 = vmatpush.msra.mxu0 0.0
    %370 = vmatpush.msra.mxu0 0.0
    %371 = vmatpush.msra.mxu0 0.0
    %372 = vmatpush.msra.mxu0 0.0
    %373 = vmatpush.msra.mxu0 0.0
    %374 = vmatpush.msra.mxu0 0.0
    %375 = vmatpush.msra.mxu0 0.0
    %376 = vmatpush.msra.mxu0 0.0
    %377 = vmatpush.msra.mxu0 0.0
    %378 = vmatpush.msra.mxu0 0.0
    %379 = vmatpush.msra.mxu0 %v199
    %380 = vmatpush.msra.mxu0 %v198
    %381 = vmatpush.msra.mxu0 %v197
    %382 = vmatpush.msra.mxu0 %v196
    %383 = vmatmul.f32.gmra.mxu0 %v365
    %v384 = vpop.f32.mrf.mxu0
    %v385 = vadd.f32 %v168, %v384
    %386 = vdwg.mxu0
    %388 = vrot.lane.b32.xlu0 %v385, 96
    %v389 = vpop.permute.xlu0 %388
    %vm391 = vcmask 1048320
    %392 = vst.msk [vmem:[#allocation10] sm:$0xff] %vm391, %v389
    %v393 = vsel %vm201, %v385, 0
    %395 = vmatpush.msra.mxu0 0.0
    %396 = vmatpush.msra.mxu0 0.0
    %397 = vmatpush.msra.mxu0 0.0
    %398 = vmatpush.msra.mxu0 0.0
    %399 = vmatpush.msra.mxu0 0.0
    %400 = vmatpush.msra.mxu0 0.0
    %401 = vmatpush.msra.mxu0 0.0
    %402 = vmatpush.msra.mxu0 0.0
    %403 = vmatpush.msra.mxu0 0.0
    %404 = vmatpush.msra.mxu0 0.0
    %405 = vmatpush.msra.mxu0 0.0
    %406 = vmatpush.msra.mxu0 0.0
    %407 = vmatpush.msra.mxu0 %v199
    %408 = vmatpush.msra.mxu0 %v198
    %409 = vmatpush.msra.mxu0 %v197
    %410 = vmatpush.msra.mxu0 %v196
    %411 = vmatmul.f32.gmra.mxu0 %v393
    %v412 = vpop.f32.mrf.mxu0
    %v413 = vadd.f32 %v169, %v412
    %414 = vdwg.mxu0
    %415 = vst.msk [vmem:[#allocation10 + $0x8] sm:$0xff] %vm201, %v413
    %v417 = vsel %vm201, %v413, 0
    %419 = vmatpush.msra.mxu0 0.0
    %420 = vmatpush.msra.mxu0 0.0
    %421 = vmatpush.msra.mxu0 0.0
    %422 = vmatpush.msra.mxu0 0.0
    %423 = vmatpush.msra.mxu0 0.0
    %424 = vmatpush.msra.mxu0 0.0
    %425 = vmatpush.msra.mxu0 0.0
    %426 = vmatpush.msra.mxu0 0.0
    %427 = vmatpush.msra.mxu0 0.0
    %428 = vmatpush.msra.mxu0 0.0
    %429 = vmatpush.msra.mxu0 0.0
    %430 = vmatpush.msra.mxu0 0.0
    %431 = vmatpush.msra.mxu0 %v199
    %432 = vmatpush.msra.mxu0 %v198
    %433 = vmatpush.msra.mxu0 %v197
    %434 = vmatpush.msra.mxu0 %v196
    %435 = vmatmul.f32.gmra.mxu0 %v417
    %v436 = vpop.f32.mrf.mxu0
    %v437 = vadd.f32 %v170, %v436
    %438 = vdwg.mxu0
    %440 = vrot.lane.b32.xlu0 %v437, 32
    %v441 = vpop.permute.xlu0 %440
    %443 = vst.msk [vmem:[#allocation10 + $0x8] sm:$0xff] %vm335, %v441
    %v444 = vsel %vm201, %v437, 0
    %446 = vmatpush.msra.mxu0 0.0
    %447 = vmatpush.msra.mxu0 0.0
    %448 = vmatpush.msra.mxu0 0.0
    %449 = vmatpush.msra.mxu0 0.0
    %450 = vmatpush.msra.mxu0 0.0
    %451 = vmatpush.msra.mxu0 0.0
    %452 = vmatpush.msra.mxu0 0.0
    %453 = vmatpush.msra.mxu0 0.0
    %454 = vmatpush.msra.mxu0 0.0
    %455 = vmatpush.msra.mxu0 0.0
    %456 = vmatpush.msra.mxu0 0.0
    %457 = vmatpush.msra.mxu0 0.0
    %458 = vmatpush.msra.mxu0 %v199
    %459 = vmatpush.msra.mxu0 %v198
    %460 = vmatpush.msra.mxu0 %v197
    %461 = vmatpush.msra.mxu0 %v196
    %462 = vmatmul.f32.gmra.mxu0 %v444
    %v463 = vpop.f32.mrf.mxu0
    %v464 = vadd.f32 %v171, %v463
    %465 = vdwg.mxu0
    %467 = vrot.lane.b32.xlu0 %v464, 64
    %v468 = vpop.permute.xlu0 %467
    %470 = vst.msk [vmem:[#allocation10 + $0x8] sm:$0xff] %vm363, %v468
    %v471 = vsel %vm201, %v464, 0
    %473 = vmatpush.msra.mxu0 0.0
    %474 = vmatpush.msra.mxu0 0.0
    %475 = vmatpush.msra.mxu0 0.0
    %476 = vmatpush.msra.mxu0 0.0
    %477 = vmatpush.msra.mxu0 0.0
    %478 = vmatpush.msra.mxu0 0.0
    %479 = vmatpush.msra.mxu0 0.0
    %480 = vmatpush.msra.mxu0 0.0
    %481 = vmatpush.msra.mxu0 0.0
    %482 = vmatpush.msra.mxu0 0.0
    %483 = vmatpush.msra.mxu0 0.0
    %484 = vmatpush.msra.mxu0 0.0
    %485 = vmatpush.msra.mxu0 %v199
    %486 = vmatpush.msra.mxu0 %v198
    %487 = vmatpush.msra.mxu0 %v197
    %488 = vmatpush.msra.mxu0 %v196
    %489 = vmatmul.f32.gmra.mxu0 %v471
    %v490 = vpop.f32.mrf.mxu0
    %v491 = vadd.f32 %v172, %v490
    %492 = vdwg.mxu0
    %494 = vrot.lane.b32.xlu0 %v491, 96
    %v495 = vpop.permute.xlu0 %494
    %497 = vst.msk [vmem:[#allocation10 + $0x8] sm:$0xff] %vm391, %v495
    // Predicated region
    $region38: #{tpu_custom_call.1} parent=1 // pred_check
      _
    $region39: #{tpu_custom_call.1} parent=1 // pred_check_branch
      %499 = sbr.rel (0) target = $region41
    $region40: #{tpu_custom_call.1} parent=1 // pred_region
      %501 = vsyncadd [#allocation4], 0
      %s503 = sshll.u32 [#allocation10], 4
      %s504 = int_to_ptr.vmem [resolvable:$true] %s503
      %s505 = sshll.u32 %s5, 4
      %s506 = int_to_ptr.hbm [resolvable:$true] %s505
      %508 = dma.vmem_to_hbm [thread:$0]  %s504, 256, %s506, [#allocation4]
    $region41: #{tpu_custom_call.1} parent=1 // pred_fallthru
      _
    // Predicated region
    $region42: #{tpu_custom_call.1} parent=1 // pred_check
      _
    $region43: #{tpu_custom_call.1} parent=1 // pred_check_branch
      %510 = sbr.rel (0) target = $region45
    $region44: #{tpu_custom_call.1} parent=1 // pred_region
      %512 = dma.done [#allocation4], 256
    $region45: #{tpu_custom_call.1} parent=1 // pred_fallthru
      _
    %513 = vsyncpa [#allocation3], 1
    %514 = vsyncpa [#allocation6], 1
    %515 = vsyncpa [#allocation9], 1
    %516 = vsyncpa [#allocation4], 1

</llo_original>
